<compile_context>
chip_gen: v7x
topology: tpu7x:2x2x1
jax: 0.10.0
libtpu: 0.0.40
codegen_flags: <defaults>
</compile_context>

<pallas_src>
import jax
import jax.numpy as jnp
import numpy as np
from jax.experimental import pallas as pl
from jax.experimental.pallas import tpu as pltpu


def _round_up(x, m):
    return ((x + m - 1) // m) * m


def _cdiv(a, b):
    return (a + b - 1) // b


def _default_parts():
    # 2-way megacore partition only pays off on chips with 2 TensorCores
    # (v4 megacore, v7x); on single-TC chips (v5e/v6e) a second partition is
    # just a serial loop with an extra epilogue, so default to 1 there.
    try:
        kind = jax.devices()[0].device_kind.lower()
    except Exception:
        return 1
    return 2 if ("v7" in kind or "v4" in kind) else 1


def _vmem_limit_bytes(tm, D, C_pad):
    # Explicit VMEM budget (double-buffered pipeline inputs + f32 temporaries)
    # rather than a blanket large request; keeps headroom on v7x (64 MiB VMEM).
    d_lanes = _round_up(D, 128)
    fea_bufs = 2 * tm * d_lanes * 2            # bf16 fea tile, double-buffered
    w_bufs = 2 * _round_up(D, 16) * C_pad * 2  # bf16 weight, double-buffered
    b_bufs = 2 * 8 * C_pad * 4                 # f32 bias
    tgt_bufs = 2 * tm * 128 * 4                # (tm,1) i32 lane-pads to 128 lanes
    out_bufs = 2 * 8 * C_pad * 4               # (1,1,C_pad) f32 partial sums
    temps = 8 * tm * C_pad * 4                 # logits / exp / onehot / select
    est = fea_bufs + w_bufs + b_bufs + tgt_bufs + out_bufs + temps
    return int(min(max(est + (4 << 20), 16 << 20), 64 << 20))


def fused_decoder_ce_kernel(fea_ref, w_ref, b_ref, tgt_ref, sum_ref):
    """Fused decoder linear + masked cross-entropy partial reduction.

    Grid = (parts, steps): axis 0 is "parallel" (megacore split), axis 1 is the
    sequential reduction over row tiles of this partition.  The (1,1,C_pad)
    output block is revisited across axis 1 and used directly as the
    accumulator (no big VMEM scratch, no separate epilogue reduce).
    """
    i = pl.program_id(1)

    @pl.when(i == 0)
    def _():
        sum_ref[...] = jnp.zeros_like(sum_ref)

    # Decoder linear on the MXU: bf16 x bf16 -> f32 accumulation, + f32 bias.
    logits = jnp.dot(fea_ref[...], w_ref[...],
                     preferred_element_type=jnp.float32) + b_ref[...]

    # Log-softmax in f32.  Padded label columns carry a -1e30 bias, so their
    # exp() underflows to exactly 0 and they do not perturb max / lse.
    m = jnp.max(logits, axis=-1, keepdims=True)
    z = logits - m
    lse = jnp.log(jnp.sum(jnp.exp(z), axis=-1, keepdims=True))

    rows, cp = logits.shape
    # tgt == -1 encodes "masked / padding / out-of-range row" -> matches no
    # column, so stale VMEM rows of a partial tail block contribute exactly 0.
    # A select (NOT a multiply) is used so NaN/Inf in stale rows cannot leak.
    onehot = (jax.lax.broadcasted_iota(jnp.int32, (rows, cp), 1)
              == tgt_ref[...])                                    # (rows, cp)
    nll_sel = jnp.where(onehot, lse - z, 0.0)   # -log p at target col, else 0

    # Per-step: one sublane-reduce to a single lane-dense vreg + a 1-vreg RMW.
    sum_ref[...] += jnp.sum(nll_sel, axis=0, keepdims=True)[None]


def decoder_and_masked_ce(fea, w, b, labels, mask, *, tm=512, parts=None):
    """fea: (N, D) bf16/f32, w: (D, C), b: (1, C) or (C,), labels/mask: (N,).

    Returns the masked-mean token cross-entropy (same math as CrossEntropyLoss
    over rows with attention_mask == 1).
    """
    N, D = fea.shape
    C = w.shape[-1]
    C_pad = _round_up(max(C, 128), 128)          # full lane width for labels

    if parts is None:
        parts = _default_parts()

    # Collapse labels + mask into one int32 target; -1 marks masked rows.
    tgt = jnp.where(mask.reshape(-1) == 1,
                    labels.reshape(-1).astype(jnp.int32),
                    jnp.int32(-1))

    # Tiling: big row tiles (clamped for tiny N), optional megacore partition.
    tm = _round_up(min(tm, _round_up(N, 8)), 8)
    steps_total = _cdiv(N, tm)                   # real fea row blocks
    P = max(1, min(parts, steps_total))
    steps = _cdiv(steps_total, P)
    rows_pad = P * steps * tm

    # Pad ONLY the tiny per-token target vector (4 B/row); fea is NOT padded.
    if rows_pad != N:
        tgt = jnp.pad(tgt, (0, rows_pad - N), constant_values=-1)
    tgt2 = tgt.reshape(rows_pad, 1)

    # bf16 activations/weights (MXU-native), f32 bias; labels padded to 128
    # lanes with a -1e30 bias so padded columns vanish in max / lse.
    fea_bf = fea if fea.dtype == jnp.bfloat16 else fea.astype(jnp.bfloat16)
    w_pad = jnp.pad(w.astype(jnp.bfloat16), ((0, 0), (0, C_pad - C)))
    b_pad = jnp.pad(b.reshape(1, C).astype(jnp.float32),
                    ((0, 0), (0, C_pad - C)), constant_values=-1e30)

    # fea index map clamps fully out-of-range blocks (from rounding steps up
    # for the partition split) to the last real block; those grid steps read
    # all -1 targets, so they contribute nothing and nothing is double-counted.
    last_fea_blk = steps_total - 1
    fea_map = lambda p, i: (jnp.minimum(p * steps + i, last_fea_blk), 0)
    tgt_map = lambda p, i: (p * steps + i, 0)

    sums = pl.pallas_call(
        fused_decoder_ce_kernel,
        out_shape=jax.ShapeDtypeStruct((P, 1, C_pad), jnp.float32),
        grid=(P, steps),
        in_specs=[
            pl.BlockSpec((tm, D), fea_map),                 # fea tile (bf16)
            pl.BlockSpec((D, C_pad), lambda p, i: (0, 0)),  # decoder weight
            pl.BlockSpec((1, C_pad), lambda p, i: (0, 0)),  # decoder bias
            pl.BlockSpec((tm, 1), tgt_map),                 # fused label/mask
        ],
        out_specs=pl.BlockSpec((1, 1, C_pad), lambda p, i: (p, 0, 0)),
        compiler_params=pltpu.CompilerParams(
            dimension_semantics=("parallel", "arbitrary"),
            vmem_limit_bytes=_vmem_limit_bytes(tm, D, C_pad)),
    )(fea_bf, w_pad, b_pad, tgt2)

    total_nll = jnp.sum(sums)
    # Exact denominator computed in JAX (free); NaN if the whole batch is
    # padding, matching the naive reference semantics.
    denom = jnp.sum(mask.reshape(-1).astype(jnp.float32))
    return total_nll / denom


def plain_forward(params, text, label, loss2_ratio=1.0, loss3_ratio=1.0):
    """JAX equivalent of Plain.forward(text, label) with aug=None."""
    input_ids = text["input_ids"]              # (B, S) int32
    attention_mask = text["attention_mask"]    # (B, S) int32
    B, S = input_ids.shape
    D = params["emb"].shape[1]

    # Encoder stub (glue): embedding lookup emitting bf16 directly so the
    # decoder kernel streams half-width activations with no extra cast pass.
    # TODO(synk): pretrained AutoModel transformer encoder (and tokenizer)
    # has no clean in-script Pallas equivalent; stubbed with an embedding lookup.
    fea = params["emb"][input_ids].reshape(B * S, D)

    # Fused decoder + masked cross-entropy (Pallas kernel).
    loss1 = decoder_and_masked_ce(
        fea, params["w"], params["b"],
        label.reshape(-1), attention_mask.reshape(-1))

    loss2 = jnp.float32(0.0)
    loss3 = jnp.float32(0.0)
    total = loss1 + loss2_ratio * loss2 + loss3_ratio * loss3
    return total, loss1, loss2, loss3


def ref_loss(fea, w, b, labels, mask):
    # Same numerics as the kernel: bf16 operands, f32 MXU accumulation.
    logits = jnp.dot(fea.astype(jnp.bfloat16), w.astype(jnp.bfloat16),
                     preferred_element_type=jnp.float32) + b.reshape(1, -1)
    logp = jax.nn.log_softmax(logits, axis=-1)
    nll = -jnp.take_along_axis(logp, labels[:, None].astype(jnp.int32),
                               axis=-1)[:, 0]
    maskf = mask.astype(jnp.float32)
    return jnp.sum(nll * maskf) / jnp.sum(maskf)


if __name__ == "__main__":
    # Small, deterministic shapes: batch=2, seq=8, hidden(fea_size)=32,
    # num_labels=8, vocab=100.
    B, S, D, C, V = 2, 8, 32, 8, 100
    key = jax.random.PRNGKey(0)
    (k_emb, k_w, k_b, k_ids, k_lbl,
     k_f2, k_w2, k_b2, k_l2) = jax.random.split(key, 9)

    params = {
        "emb": (jax.random.normal(k_emb, (V, D), jnp.float32) * 0.5
                ).astype(jnp.bfloat16),
        "w":   jax.random.normal(k_w, (D, C), jnp.float32) * 0.1,
        "b":   jax.random.normal(k_b, (1, C), jnp.float32) * 0.01,
    }

    input_ids = jax.random.randint(k_ids, (B, S), 0, V, dtype=jnp.int32)
    # attention_mask: first sample fully valid, second has 2 padding tokens.
    lengths = jnp.array([[S], [S - 2]], dtype=jnp.int32)
    attention_mask = (jnp.arange(S)[None, :] < lengths).astype(jnp.int32)
    labels = jax.random.randint(k_lbl, (B, S), 0, C, dtype=jnp.int32)

    text = {"input_ids": input_ids, "attention_mask": attention_mask}

    total, loss1, loss2, loss3 = plain_forward(params, text, labels)
    total = jax.block_until_ready(total)

    # Cross-check against a pure-JAX reference of the same math.
    fea = params["emb"][input_ids].reshape(B * S, D)
    want = ref_loss(fea, params["w"], params["b"],
                    labels.reshape(-1), attention_mask.reshape(-1))
    np.testing.assert_allclose(np.asarray(loss1), np.asarray(want),
                               rtol=1e-5, atol=1e-5)
    assert float(loss2) == 0.0 and float(loss3) == 0.0
    np.testing.assert_allclose(np.asarray(total), np.asarray(loss1),
                               rtol=1e-6, atol=1e-6)

    # Stress the new tiling paths: partial (non-divisible) tail fea block,
    # multiple row steps, 2-way partition with a fully out-of-range grid step.
    N2, D2, C2 = 300, 32, 8
    fea2 = jax.random.normal(k_f2, (N2, D2), jnp.float32).astype(jnp.bfloat16)
    w2 = jax.random.normal(k_w2, (D2, C2), jnp.float32) * 0.2
    b2 = jax.random.normal(k_b2, (1, C2), jnp.float32) * 0.01
    lbl2 = jax.random.randint(k_l2, (N2,), 0, C2, dtype=jnp.int32)
    msk2 = (jnp.arange(N2) % 7 != 0).astype(jnp.int32)
    got2 = decoder_and_masked_ce(fea2, w2, b2, lbl2, msk2, tm=128, parts=2)
    got2 = jax.block_until_ready(got2)
    want2 = ref_loss(fea2, w2, b2, lbl2, msk2)
    np.testing.assert_allclose(np.asarray(got2), np.asarray(want2),
                               rtol=2e-5, atol=1e-5)

    print("KERNEL_OK")
</pallas_src>

<mosaic_0001>
module attributes {stable_mosaic.version = 11 : i64} {
  func.func @fused_decoder_ce_kernel(%arg0: i32, %arg1: i32, %arg2: memref<16x32xbf16, #tpu.memory_space<vmem>>, %arg3: memref<32x128xbf16, #tpu.memory_space<vmem>>, %arg4: memref<1x128xf32, #tpu.memory_space<vmem>>, %arg5: memref<16x1xi32, #tpu.memory_space<vmem>>, %arg6: memref<1x1x128xf32, #tpu.memory_space<vmem>>) attributes {dimension_semantics = [#tpu.dimension_semantics<parallel>, #tpu.dimension_semantics<arbitrary>], iteration_bounds = array<i64: 1, 1>, scalar_prefetch = 0 : i64, scratch_operands = 0 : i64, tpu.core_type = #tpu.core_type<tc>, window_params = [{transform_indices = @transform_0, window_bounds = array<i64: 16, 32>}, {pipeline_mode = #tpu.pipeline_mode<synchronous>, transform_indices = @transform_1, window_bounds = array<i64: 32, 128>}, {pipeline_mode = #tpu.pipeline_mode<synchronous>, transform_indices = @transform_2, window_bounds = array<i64: 1, 128>}, {transform_indices = @transform_3, window_bounds = array<i64: 16, 1>}, {transform_indices = @transform_4, window_bounds = array<i64: 1, 1, 128>}]} {
    %c0_i32 = arith.constant 0 : i32
    %0 = arith.cmpi eq, %arg1, %c0_i32 : i32
    %1 = arith.extui %0 : i1 to i32
    %c0_i32_0 = arith.constant 0 : i32
    %2 = arith.cmpi ne, %1, %c0_i32_0 : i32
    scf.if %2 {
      %cst_18 = arith.constant 0.000000e+00 : f32
      %31 = vector.broadcast %cst_18 : f32 to vector<1x1x128xf32>
      %c0_19 = arith.constant 0 : index
      %c0_20 = arith.constant 0 : index
      %c0_21 = arith.constant 0 : index
      %32 = vector.load %arg6[%c0_19, %c0_20, %c0_21] : memref<1x1x128xf32, #tpu.memory_space<vmem>>, vector<1x1x128xf32>
      tpu.vector_store %arg6[%c0_19, %c0_20, %c0_21], %31 {strides = array<i32>} : memref<1x1x128xf32, #tpu.memory_space<vmem>>, vector<1x1x128xf32>,
    } else {
    }
    %c0 = arith.constant 0 : index
    %c0_1 = arith.constant 0 : index
    %3 = vector.load %arg2[%c0, %c0_1] : memref<16x32xbf16, #tpu.memory_space<vmem>>, vector<16x32xbf16>
    %c0_2 = arith.constant 0 : index
    %c0_3 = arith.constant 0 : index
    %4 = vector.load %arg3[%c0_2, %c0_3] : memref<32x128xbf16, #tpu.memory_space<vmem>>, vector<32x128xbf16>
    %cst = arith.constant dense<0.000000e+00> : vector<16x128xf32>
    %5 = tpu.matmul %3, %4, %cst {dimension_numbers = #tpu.dot_dimension_numbers<[1], [0], [0], [1], [0, 0, 1, 1], [], []>} : vector<16x32xbf16>, vector<32x128xbf16>, vector<16x128xf32> -> vector<16x128xf32>
    %c0_4 = arith.constant 0 : index
    %c0_5 = arith.constant 0 : index
    %6 = vector.load %arg4[%c0_4, %c0_5] : memref<1x128xf32, #tpu.memory_space<vmem>>, vector<1x128xf32>
    %7 = vector.broadcast %6 : vector<1x128xf32> to vector<16x128xf32>
    %8 = arith.addf %5, %7 : vector<16x128xf32>
    %cst_6 = arith.constant dense<0xFF800000> : vector<16xf32>
    %9 = vector.multi_reduction <maximumf>, %8, %cst_6 [1] : vector<16x128xf32> to vector<16xf32>
    %10 = vector.shape_cast %9 : vector<16xf32> to vector<16x1xf32>
    %11 = vector.broadcast %10 : vector<16x1xf32> to vector<16x128xf32>
    %12 = arith.subf %8, %11 : vector<16x128xf32>
    %13 = math.exp %12 : vector<16x128xf32>
    %cst_7 = arith.constant dense<0.000000e+00> : vector<16xf32>
    %14 = vector.multi_reduction <add>, %13, %cst_7 [1] : vector<16x128xf32> to vector<16xf32>
    %15 = vector.shape_cast %14 : vector<16xf32> to vector<16x1xf32>
    %16 = math.log %15 : vector<16x1xf32>
    %17 = tpu.iota {dimensions = array<i32: 1>} : vector<16x128xi32>
    %c0_8 = arith.constant 0 : index
    %c0_9 = arith.constant 0 : index
    %18 = vector.load %arg5[%c0_8, %c0_9] : memref<16x1xi32, #tpu.memory_space<vmem>>, vector<16x1xi32>
    %19 = vector.broadcast %18 : vector<16x1xi32> to vector<16x128xi32>
    %20 = arith.cmpi eq, %17, %19 : vector<16x128xi32>
    %21 = vector.broadcast %16 : vector<16x1xf32> to vector<16x128xf32>
    %22 = arith.subf %21, %12 : vector<16x128xf32>
    %cst_10 = arith.constant 0.000000e+00 : f32
    %23 = vector.broadcast %cst_10 : f32 to vector<16x128xf32>
    %24 = arith.select %20, %22, %23 : vector<16x128xi1>, vector<16x128xf32>
    %c0_11 = arith.constant 0 : index
    %c0_12 = arith.constant 0 : index
    %c0_13 = arith.constant 0 : index
    %25 = vector.load %arg6[%c0_11, %c0_12, %c0_13] : memref<1x1x128xf32, #tpu.memory_space<vmem>>, vector<1x1x128xf32>
    %cst_14 = arith.constant dense<0.000000e+00> : vector<128xf32>
    %26 = vector.multi_reduction <add>, %24, %cst_14 [0] : vector<16x128xf32> to vector<128xf32>
    %27 = vector.shape_cast %26 : vector<128xf32> to vector<1x128xf32>
    %28 = vector.shape_cast %27 : vector<1x128xf32> to vector<1x1x128xf32>
    %29 = arith.addf %25, %28 : vector<1x1x128xf32>
    %c0_15 = arith.constant 0 : index
    %c0_16 = arith.constant 0 : index
    %c0_17 = arith.constant 0 : index
    %30 = vector.load %arg6[%c0_15, %c0_16, %c0_17] : memref<1x1x128xf32, #tpu.memory_space<vmem>>, vector<1x1x128xf32>
    tpu.vector_store %arg6[%c0_15, %c0_16, %c0_17], %29 {strides = array<i32>} : memref<1x1x128xf32, #tpu.memory_space<vmem>>, vector<1x1x128xf32>,
    return
  }
  func.func @transform_0(%arg0: i32, %arg1: i32) -> (i32, i32) {
    %c1_i32 = arith.constant 1 : i32
    %0 = arith.muli %arg0, %c1_i32 : i32
    %1 = arith.addi %0, %arg1 : i32
    %c0_i32 = arith.constant 0 : i32
    %2 = arith.minsi %1, %c0_i32 : i32
    %c0_i32_0 = arith.constant 0 : i32
    %c0_i32_1 = arith.constant 0 : i32
    return %2, %c0_i32_0 : i32, i32
  }
  func.func @transform_1(%arg0: i32, %arg1: i32) -> (i32, i32) {
    %c0_i32 = arith.constant 0 : i32
    %c0_i32_0 = arith.constant 0 : i32
    %c0_i32_1 = arith.constant 0 : i32
    return %c0_i32, %c0_i32_0 : i32, i32
  }
  func.func @transform_2(%arg0: i32, %arg1: i32) -> (i32, i32) {
    %c0_i32 = arith.constant 0 : i32
    %c0_i32_0 = arith.constant 0 : i32
    %c0_i32_1 = arith.constant 0 : i32
    return %c0_i32, %c0_i32_0 : i32, i32
  }
  func.func @transform_3(%arg0: i32, %arg1: i32) -> (i32, i32) {
    %c1_i32 = arith.constant 1 : i32
    %0 = arith.muli %arg0, %c1_i32 : i32
    %1 = arith.addi %0, %arg1 : i32
    %c0_i32 = arith.constant 0 : i32
    %c0_i32_0 = arith.constant 0 : i32
    return %1, %c0_i32 : i32, i32
  }
  func.func @transform_4(%arg0: i32, %arg1: i32) -> (i32, i32, i32) {
    %c0_i32 = arith.constant 0 : i32
    %c0_i32_0 = arith.constant 0 : i32
    %c0_i32_1 = arith.constant 0 : i32
    return %arg0, %c0_i32, %c0_i32_0 : i32, i32, i32
  }
}

</mosaic_0001>

<llo_original>
// kernel: tpu_custom_call.1
$region0: #{tpu_custom_call.1}
  #allocation0 [shape = 'u32[]', space=smem, size = 0x4, offset = 0x4, fixed_abs, tag = 'smem constant byte address 0x4 - core index']
  #allocation1 [shape = 'u32[144,128]{1,0:T(1,128)}', space=vmem, size = 0x12000, scoped, tag = 'internal scratch']
  %s0 = inlined_call_operand.hbm [shape: bf16[16,32], index: 0, kind: input, shape index: {}]
  %s1 = inlined_call_operand.vmem [shape: bf16[32,128], index: 1, kind: input, shape index: {}]
  %s2 = inlined_call_operand.vmem [shape: f32[1,128], index: 2, kind: input, shape index: {}]
  %s3 = inlined_call_operand.vmem [shape: s32[16,1], index: 3, kind: input, shape index: {}]
  %s4 = inlined_call_operand.hbm [shape: f32[1,1,128], index: 4, kind: output, shape index: {}]
  %s5 = sld [smem:[#allocation0]]
  $region34: #{tpu_custom_call.1} parent=0
    _
  %s7 = ssub.s32 1, %s5
  %s8 = scalar_select 0, %s7, %s5
  $region1: #{tpu_custom_call.1} parent=0
    #allocation2 [shape = 'u8[4096]{0}', space=vmem, size = 0x1000, scoped, tag = 'input window, operand 0, single buffered']
    #allocation3 [shape = 's32[1]{0}', space=sflag, size = 0x4, scoped, tag = 'scoped memory for tpu_custom_call.1']
    #allocation4 [shape = 's32[1]{0}', space=sflag, size = 0x4, scoped, tag = 'scoped memory for tpu_custom_call.1']
    #allocation5 [shape = 'u8[512]{0}', space=vmem, size = 0x400, scoped, tag = 'output window, operand 0, single buffered']
    %9 = vsyncpa [#allocation3], 0
    %10 = vsyncpa [#allocation4], 0
    // Predicated region
    $region2: #{tpu_custom_call.1} parent=1 // pred_check
      _
    $region3: #{tpu_custom_call.1} parent=1 // pred_check_branch
      %12 = sbr.rel (0) target = $region5
    $region4: #{tpu_custom_call.1} parent=1 // pred_region
      %s13 = sadd.s32 0, 0
      %p14 = scmp.lt.s32.totalorder %s13, 0
      %s15 = scalar_select %p14, %s13, 0
      %s16 = smul.u32 2, %s15
      %s18 = ssub.s32 128, 128
      %19 = vsyncadd [#allocation3], %s18
      %s20 = smul.addr %s16, 64
      %s21 = scalar_lea.hbm %s0, %s20
      %s22 = sshll.u32 [#allocation2], 4
      %s23 = int_to_ptr.vmem [resolvable:$true] %s22
      %28 = dma.hbm_to_vmem [thread:$0]  %s21, 128, %s23, [#allocation3], 64, 64, 4
    $region5: #{tpu_custom_call.1} parent=1 // pred_fallthru
      _
    // Predicated region
    $region6: #{tpu_custom_call.1} parent=1 // pred_check
      _
    $region7: #{tpu_custom_call.1} parent=1 // pred_check_branch
      %30 = sbr.rel (0) target = $region9
    $region8: #{tpu_custom_call.1} parent=1 // pred_region
      _
    $region9: #{tpu_custom_call.1} parent=1 // pred_fallthru
      _
    // Predicated region
    $region10: #{tpu_custom_call.1} parent=1 // pred_check
      _
    $region11: #{tpu_custom_call.1} parent=1 // pred_check_branch
      %32 = sbr.rel (0) target = $region13
    $region12: #{tpu_custom_call.1} parent=1 // pred_region
      _
    $region13: #{tpu_custom_call.1} parent=1 // pred_fallthru
      _
    // Predicated region
    $region14: #{tpu_custom_call.1} parent=1 // pred_check
      _
    $region15: #{tpu_custom_call.1} parent=1 // pred_check_branch
      %34 = sbr.rel (0) target = $region17
    $region16: #{tpu_custom_call.1} parent=1 // pred_region
      %s35 = sadd.s32 0, 0
      %s36 = smul.u32 2, %s35
      %p37 = scmp.lt.s32.totalorder %s36, 1
      %s38 = scalar_select %p37, %s36, 1
      %s39 = smul.addr %s38, 8
      %s40 = scalar_lea.vmem %s3, %s39
      %s41 = sadd.s32 0, 0
      %s42 = smul.u32 2, %s41
    $region17: #{tpu_custom_call.1} parent=1 // pred_fallthru
      _
    // Predicated region
    $region18: #{tpu_custom_call.1} parent=1 // pred_check
      _
    $region19: #{tpu_custom_call.1} parent=1 // pred_check_branch
      %44 = sbr.rel (0) target = $region21
    $region20: #{tpu_custom_call.1} parent=1 // pred_region
      %45 = dma.done [#allocation3], 128
    $region21: #{tpu_custom_call.1} parent=1 // pred_fallthru
      _
    %s46 = sadd.s32 0, 0
    %s47 = smul.u32 2, %s46
    %p48 = scmp.lt.s32.totalorder %s47, 1
    %s49 = scalar_select %p48, %s47, 1
    %s50 = smul.addr %s49, 8
    %s51 = scalar_lea.vmem %s3, %s50
    %s52 = sadd.s32 0, 0
    %p53 = scmp.lt.s32.totalorder %s52, 0
    %s54 = scalar_select %p53, %s52, 0
    %s55 = smul.u32 2, %s54
    %s56 = sadd.s32 0, 0
    %s57 = smul.u32 2, %s56
    %p58 = scmp.lt.s32.totalorder %s57, 1
    %s59 = scalar_select %p58, %s57, 1
    %s60 = smul.addr %s59, 8
    %s61 = scalar_lea.vmem %s3, %s60
    %s62 = sadd.s32 0, 0
    %s63 = smul.u32 2, %s62
    %p65 = scmp.eq.s32.totalorder 0, 0
    // Predicated region
    $region22: #{tpu_custom_call.1} parent=1 // pred_check
      %p66 = pneg %p65
    $region23: #{tpu_custom_call.1} parent=1 // pred_check_branch
      %68 = sbr.rel (%p66) target = $region25
    $region24: #{tpu_custom_call.1} parent=1 // pred_region
      %69 = vst [vmem:[#allocation5] sm:$0x1] 0.0
    $region25: #{tpu_custom_call.1} parent=1 // pred_fallthru
      _
    %v70 = vld [vmem:[#allocation2] sm:$0xf]
    %v71 = vld [vmem:[#allocation2 + $0x4] sm:$0xf]
    %v72 = vld [vmem:[%s1] sm:$0xf]
    %v73 = vld [vmem:[%s1 + $0x4] sm:$0xf]
    %v74 = vld [vmem:[%s1 + $0x8] sm:$0xf]
    %v75 = vld [vmem:[%s1 + $0xc] sm:$0xf]
    %v76 = vld [vmem:[%s2] sm:$0x1]
    %v78 = vlaneseq
    %v79 = vshrl.u32 %v78, 7
    %v80 = vsub.s32 0, %v79
    %v81 = vrot.slane %v76, %v80
    %v85 = vunpack.c.l.b16 %v70
    %v86 = vunpack.c.l.b16 %v71
    %v87 = vpack.c.b16 %v86, %v85
    %v92 = vunpack.c.l.b16 %v72
    %v93 = vunpack.c.l.b16 %v73
    %v94 = vunpack.c.l.b16 %v74
    %v95 = vunpack.c.l.b16 %v75
    %v96 = vpack.c.b16 %v93, %v92
    %v97 = vpack.c.b16 %v95, %v94
    %vm100 = vcmask 261120
    %v102 = vsel %vm100, %v87, 0
    %104 = vmatprep.subr.bf16.mxu0 0
    %105 = vmatpush1.bf16.msra.mxu0 %v96
    %106 = vmatprep.subr.bf16.mxu0 0
    %107 = vmatpush1.bf16.msra.mxu0 %v97
    %108 = vmatprep.subr.bf16.mxu0 0
    %109 = vmatpush1.bf16.msra.mxu0 0
    %110 = vmatprep.subr.bf16.mxu0 0
    %111 = vmatpush1.bf16.msra.mxu0 0
    %112 = vmatprep.subr.bf16.mxu0 0
    %113 = vmatpush1.bf16.msra.mxu0 0
    %114 = vmatprep.subr.bf16.mxu0 0
    %115 = vmatpush1.bf16.msra.mxu0 0
    %116 = vmatprep.subr.bf16.mxu0 0
    %117 = vmatpush1.bf16.msra.mxu0 0
    %118 = vmatprep.subr.bf16.mxu0 0
    %119 = vmatpush1.bf16.msra.mxu0 0
    %120 = vmatprep.subr.bf16.mxu0 0
    %121 = vmatpush1.bf16.msra.mxu0 0
    %122 = vmatprep.subr.bf16.mxu0 0
    %123 = vmatpush1.bf16.msra.mxu0 0
    %124 = vmatprep.subr.bf16.mxu0 0
    %125 = vmatpush1.bf16.msra.mxu0 0
    %126 = vmatprep.subr.bf16.mxu0 0
    %127 = vmatpush1.bf16.msra.mxu0 0
    %128 = vmatprep.subr.bf16.mxu0 0
    %129 = vmatpush1.bf16.msra.mxu0 0
    %130 = vmatprep.subr.bf16.mxu0 0
    %131 = vmatpush1.bf16.msra.mxu0 0
    %132 = vmatprep.subr.bf16.mxu0 0
    %133 = vmatpush1.bf16.msra.mxu0 0
    %134 = vmatprep.subr.bf16.mxu0 0
    %135 = vmatpush1.bf16.msra.mxu0 0
    %136 = vmatprep.mubr.bf16.mxu0 0
    %137 = vmatmul.mubr.bf16.gmra.mrb[0].mxu0 %v102
    %v138 = vpop.f32.mrb[0].mxu0
    %v139 = vadd.f32 %v81, %v138
    %v140 = vpop.f32.mrb[0].mxu0
    %v141 = vpop.f32.mrb[0].mxu0
    %v142 = vadd.f32 %v81, %v141
    %v143 = vpop.f32.mrb[0].mxu0
    %144 = vdwg.mxu0
    %145 = vmax.xlane.f32.xlu0 %v139
    %v146 = vpop.xlane.xlu0 %145
    %147 = vmax.xlane.f32.xlu0 %v142
    %v148 = vpop.xlane.xlu0 %147
    %v149 = vsub.f32 %v139, %v146
    %v150 = vsub.f32 %v142, %v148
    %v151 = vmul.f32 %v149, 1.442695
    %v152 = vpow.pop %v151
    %v153 = vmul.f32 %v150, 1.442695
    %v154 = vpow.pop %v153
    %155 = vadd.xlane.f32.xlu0 %v152
    %v156 = vpop.xlane.xlu0 %155
    %157 = vadd.xlane.f32.xlu0 %v154
    %v158 = vpop.xlane.xlu0 %157
    %v159 = vlog2.pop %v156
    %v160 = vmul.f32 %v159, 0.6931472
    %v161 = vlog2.pop %v158
    %v162 = vmul.f32 %v161, 0.6931472
    %v163 = vlaneseq
    %v164 = vand.u32 %v163, 127
    %v165 = vld [vmem:[%s61] sm:$0xff]
    %v166 = vld [vmem:[%s61 + $0x8] sm:$0xff]
    %167 = vset.pattern.permute.xlu0 0
    %168 = vperm.xlu0 %167, %v165
    %v169 = vpop.permute.xlu0 %168
    %170 = vset.pattern.permute.xlu0 0
    %171 = vperm.xlu0 %170, %v166
    %v172 = vpop.permute.xlu0 %171
    %vm173 = vcmp.eq.s32.totalorder %v164, %v169
    %vm174 = vcmp.eq.s32.totalorder %v164, %v172
    %v175 = vsub.f32 %v160, %v149
    %v176 = vsub.f32 %v162, %v150
    %v177 = vsel %vm173, %v175, 0.0
    %v178 = vsel %vm174, %v176, 0.0
    %v179 = vld [vmem:[#allocation5] sm:$0x1]
    %v180 = vadd.f32 %v177, %v178
    %v181 = vrot.slane %v180, 4
    %v182 = vadd.f32 %v180, %v181
    %v183 = vrot.slane %v182, 2
    %v184 = vadd.f32 %v182, %v183
    %v185 = vrot.slane %v184, 1
    %v186 = vadd.f32 %v184, %v185
    %v187 = vadd.f32 %v179, %v186
    %188 = vst [vmem:[#allocation5] sm:$0x1] %v187
    // Predicated region
    $region26: #{tpu_custom_call.1} parent=1 // pred_check
      _
    $region27: #{tpu_custom_call.1} parent=1 // pred_check_branch
      %190 = sbr.rel (0) target = $region29
    $region28: #{tpu_custom_call.1} parent=1 // pred_region
      %s192 = ssub.s32 16, 16
      %193 = vsyncadd [#allocation4], %s192
      %s195 = sshll.u32 [#allocation5], 4
      %s196 = int_to_ptr.vmem [resolvable:$true] %s195
      %198 = dma.vmem_to_hbm [thread:$0]  %s196, 16, %s4, [#allocation4]
    $region29: #{tpu_custom_call.1} parent=1 // pred_fallthru
      _
    // Predicated region
    $region30: #{tpu_custom_call.1} parent=1 // pred_check
      _
    $region31: #{tpu_custom_call.1} parent=1 // pred_check_branch
      %200 = sbr.rel (0) target = $region33
    $region32: #{tpu_custom_call.1} parent=1 // pred_region
      %201 = dma.done [#allocation4], 16
    $region33: #{tpu_custom_call.1} parent=1 // pred_fallthru
      _
    %202 = vsyncpa [#allocation3], 1
    %203 = vsyncpa [#allocation4], 1

</llo_original>
